<compile_context>
chip_gen: v7x
topology: tpu7x:2x2x1
jax: 0.10.0
libtpu: 0.0.40
codegen_flags: <defaults>
</compile_context>

<pallas_src>
import functools

import jax
import jax.numpy as jnp
from jax.experimental import pallas as pl
from jax.experimental.pallas import tpu as pltpu

LANE = 128            # lane width (last dim of every block)
SUBLANE = 8           # f32 sublane tile
MAX_TILE_ROWS = 8192  # rows per grid step: 8192*128*4B = 4 MiB per f32 block
NCORES = 2            # leading "parallel" axis; sharded across v7x's 2 TCs


def _round_up(a, b):
    return ((a + b - 1) // b) * b


def _dice_partial_kernel(x_ref, t_ref, out_ref, a_acc, b_acc, t_acc, *,
                         tile_rows, rows, steps_per_core, needs_mask):
    c = pl.program_id(0)           # core-chunk index ("parallel")
    i = pl.program_id(1)           # streaming step within the chunk
    blk = c * steps_per_core + i   # logical (unclamped) row-block index
    # NOTE: blk * tile_rows is a *row* index (<= n/128), so int32 is safe for
    # any realistic loss-sized input.

    @pl.when(i == 0)
    def _init():
        a_acc[...] = jnp.zeros_like(a_acc)
        b_acc[...] = jnp.zeros_like(b_acc)
        t_acc[...] = jnp.zeros_like(t_acc)

    # Upcast on load; always accumulate in f32 (legal on v5e, halves HBM
    # traffic for bf16 callers).
    x = x_ref[...].astype(jnp.float32)
    t = t_ref[...].astype(jnp.float32)

    # Affine-deferred sigmoid: only tanh(x/2) in the hot loop (one EUP op per
    # element); the *0.5 and +0.5 are reconstructed once in the wrapper.
    y = jnp.tanh(0.5 * x)

    groups = tile_rows // SUBLANE

    def _accumulate(yv, tv):
        # Fold each (tile_rows, 128) tile into (8, 128) vreg-shaped
        # accumulators with pure vreg adds; no cross-lane XLU reduction here.
        a_acc[...] += jnp.sum((yv * tv).reshape(groups, SUBLANE, LANE), axis=0)
        b_acc[...] += jnp.sum(yv.reshape(groups, SUBLANE, LANE), axis=0)
        t_acc[...] += jnp.sum(tv.reshape(groups, SUBLANE, LANE), axis=0)

    if needs_mask:
        block_end = (blk + 1) * tile_rows

        @pl.when(block_end <= rows)          # steady state: zero mask work
        def _steady():
            _accumulate(y, t)

        @pl.when(block_end > rows)           # at most once per core-chunk
        def _ragged():
            # Zero rows past the true row count (covers the partial last
            # block's unspecified out-of-bounds reads and the duplicated
            # extra block of the second core-chunk).
            rid = jax.lax.broadcasted_iota(jnp.int32, (tile_rows, LANE), 0)
            valid = (blk * tile_rows + rid) < rows
            _accumulate(jnp.where(valid, y, 0.0), jnp.where(valid, t, 0.0))
    else:
        _accumulate(y, t)

    @pl.when(i == steps_per_core - 1)
    def _finalize():
        out_ref[0, 0, :, :] = a_acc[...]     # sum(tanh(x/2) * t)
        out_ref[0, 1, :, :] = b_acc[...]     # sum(tanh(x/2))
        out_ref[0, 2, :, :] = t_acc[...]     # sum(t)


def dice_loss(inputs, targets, smooth=1.0):
    """Pallas implementation of DiceLoss.forward.

    Accepts any shapes/dtypes (e.g. NCHW bf16 logits, f32/bf16 targets); the
    loss flattens everything, so layout is irrelevant.  Data stays in its
    native dtype all the way into the kernel (upcast happens on load).
    """
    x = inputs.reshape(-1)   # free reshape, native dtype
    t = targets.reshape(-1)
    n = x.shape[0]

    rows = n // LANE
    n_main = rows * LANE

    # <128-element ragged lane tail: tiny jnp epilogue instead of padding the
    # whole flattened arrays (jnp.pad would re-materialize both inputs).
    if n_main < n:
        xt = x[n_main:].astype(jnp.float32)
        tt = t[n_main:].astype(jnp.float32)
        st = jax.nn.sigmoid(xt)
        tail_inter = jnp.sum(st * tt)
        tail_s = jnp.sum(st)
        tail_t = jnp.sum(tt)
    else:
        tail_inter = tail_s = tail_t = jnp.float32(0.0)

    if rows > 0:
        if n_main == n:
            x_main, t_main = x, t
        else:
            x_main, t_main = x[:n_main], t[:n_main]
        x2 = x_main.reshape(rows, LANE)
        t2 = t_main.reshape(rows, LANE)

        tile_rows = min(MAX_TILE_ROWS, _round_up(rows, SUBLANE))
        nblocks = pl.cdiv(rows, tile_rows)
        spc = pl.cdiv(nblocks, NCORES)   # streaming steps per core-chunk
        needs_mask = (rows % tile_rows != 0) or (NCORES * spc != nblocks)

        kernel = functools.partial(
            _dice_partial_kernel,
            tile_rows=int(tile_rows),
            rows=int(rows),
            steps_per_core=int(spc),
            needs_mask=bool(needs_mask),
        )

        def in_map(c, i):
            # Clamp so the DMA never targets a block fully past the array;
            # the duplicated/extra block is zeroed by the in-kernel row mask.
            return (jnp.minimum(c * spc + i, nblocks - 1), 0)

        block_bytes = tile_rows * LANE * (x2.dtype.itemsize + t2.dtype.itemsize)
        out_bytes = NCORES * 3 * SUBLANE * LANE * 4

        parts = pl.pallas_call(
            kernel,
            out_shape=jax.ShapeDtypeStruct((NCORES, 3, SUBLANE, LANE),
                                           jnp.float32),
            grid_spec=pltpu.PrefetchScalarGridSpec(
                num_scalar_prefetch=0,
                grid=(NCORES, spc),
                in_specs=[
                    pl.BlockSpec((tile_rows, LANE), in_map),
                    pl.BlockSpec((tile_rows, LANE), in_map),
                ],
                out_specs=pl.BlockSpec((1, 3, SUBLANE, LANE),
                                       lambda c, i: (c, 0, 0, 0)),
                scratch_shapes=[
                    pltpu.VMEM((SUBLANE, LANE), jnp.float32),  # sum(tanh*t)
                    pltpu.VMEM((SUBLANE, LANE), jnp.float32),  # sum(tanh)
                    pltpu.VMEM((SUBLANE, LANE), jnp.float32),  # sum(t)
                ],
            ),
            compiler_params=pltpu.CompilerParams(
                dimension_semantics=("parallel", "arbitrary"),
                # 2 inputs x 2 pipeline buffers x block + slack for scratch,
                # outputs and compiler temporaries.  Fits every generation
                # (<= 24 MiB even for f32 at the max tile).
                vmem_limit_bytes=int(2 * block_bytes + (8 << 20)),
            ),
            cost_estimate=pl.CostEstimate(
                flops=6 * n_main,
                transcendentals=n_main,
                bytes_accessed=n_main * (x2.dtype.itemsize + t2.dtype.itemsize)
                + out_bytes,
            ),
        )(x2, t2)

        sums = jnp.sum(parts, axis=(0, 2, 3))       # (3,) : A, B, T
        a_sum, b_sum, t_sum = sums[0], sums[1], sums[2]
    else:
        a_sum = b_sum = t_sum = jnp.float32(0.0)

    # sigmoid(x) = 0.5 * (tanh(x/2) + 1)  =>
    #   sum(sigmoid*t) = 0.5*(A + T),   sum(sigmoid) = 0.5*(B + n_main)
    inter = 0.5 * (a_sum + t_sum) + tail_inter
    sum_s = 0.5 * (b_sum + float(n_main)) + tail_s
    sum_t = t_sum + tail_t
    dice = (2.0 * inter + float(smooth)) / (sum_s + sum_t + float(smooth))
    return 1.0 - dice


def _dice_loss_ref(inputs, targets, smooth=1.0):
    s = jax.nn.sigmoid(inputs.reshape(-1).astype(jnp.float32))
    t = targets.reshape(-1).astype(jnp.float32)
    inter = jnp.sum(s * t)
    dice = (2.0 * inter + smooth) / (jnp.sum(s) + jnp.sum(t) + smooth)
    return 1.0 - dice


if __name__ == "__main__":
    key = jax.random.PRNGKey(0)
    kx, kt, kx2, kt2 = jax.random.split(key, 4)

    # NCHW logits and binary targets, as the UNet segmentation loss expects.
    x = jax.random.normal(kx, (2, 4, 16, 16), dtype=jnp.float32)
    targets = (jax.random.uniform(kt, (2, 4, 16, 16)) > 0.5).astype(jnp.float32)

    loss = jax.jit(dice_loss)(x, targets)
    loss = jax.block_until_ready(loss)
    ref = _dice_loss_ref(x, targets)
    assert jnp.allclose(loss, ref, atol=1e-5, rtol=1e-5), (loss, ref)

    # Odd, non-128-multiple size: exercises the ragged-row mask path and the
    # <128-element lane-tail epilogue.
    x_odd = jax.random.normal(kx2, (3, 5, 7, 11), dtype=jnp.float32)
    t_odd = (jax.random.uniform(kt2, (3, 5, 7, 11)) > 0.5).astype(jnp.float32)
    loss_odd = jax.block_until_ready(jax.jit(dice_loss)(x_odd, t_odd))
    ref_odd = _dice_loss_ref(x_odd, t_odd)
    assert jnp.allclose(loss_odd, ref_odd, atol=1e-5, rtol=1e-5), (loss_odd, ref_odd)

    print("KERNEL_OK")
</pallas_src>

<mosaic_0001>
module attributes {stable_mosaic.version = 11 : i64} {
  func.func @_dice_partial_kernel(%arg0: i32, %arg1: i32, %arg2: memref<16x128xf32, #tpu.memory_space<vmem>>, %arg3: memref<16x128xf32, #tpu.memory_space<vmem>>, %arg4: memref<1x3x8x128xf32, #tpu.memory_space<vmem>>, %arg5: memref<8x128xf32, #tpu.memory_space<vmem>>, %arg6: memref<8x128xf32, #tpu.memory_space<vmem>>, %arg7: memref<8x128xf32, #tpu.memory_space<vmem>>) attributes {dimension_semantics = [#tpu.dimension_semantics<parallel>, #tpu.dimension_semantics<arbitrary>], iteration_bounds = array<i64: 2, 1>, scalar_prefetch = 0 : i64, scratch_operands = 3 : i64, tpu.core_type = #tpu.core_type<tc>, window_params = [{transform_indices = @transform_0, window_bounds = array<i64: 16, 128>}, {transform_indices = @transform_1, window_bounds = array<i64: 16, 128>}, {transform_indices = @transform_2, window_bounds = array<i64: 1, 3, 8, 128>}]} {
    %c1_i32 = arith.constant 1 : i32
    %0 = arith.muli %arg0, %c1_i32 : i32
    %1 = arith.addi %0, %arg1 : i32
    %c0_i32 = arith.constant 0 : i32
    %2 = arith.cmpi eq, %arg1, %c0_i32 : i32
    %3 = arith.extui %2 : i1 to i32
    %c0_i32_0 = arith.constant 0 : i32
    %4 = arith.cmpi ne, %3, %c0_i32_0 : i32
    scf.if %4 {
      %cst_11 = arith.constant 0.000000e+00 : f32
      %21 = vector.broadcast %cst_11 : f32 to vector<8x128xf32>
      %c0_12 = arith.constant 0 : index
      %c0_13 = arith.constant 0 : index
      %22 = vector.load %arg5[%c0_12, %c0_13] : memref<8x128xf32, #tpu.memory_space<vmem>>, vector<8x128xf32>
      tpu.vector_store %arg5[%c0_12, %c0_13], %21 {strides = array<i32>} : memref<8x128xf32, #tpu.memory_space<vmem>>, vector<8x128xf32>,
      %cst_14 = arith.constant 0.000000e+00 : f32
      %23 = vector.broadcast %cst_14 : f32 to vector<8x128xf32>
      %c0_15 = arith.constant 0 : index
      %c0_16 = arith.constant 0 : index
      %24 = vector.load %arg6[%c0_15, %c0_16] : memref<8x128xf32, #tpu.memory_space<vmem>>, vector<8x128xf32>
      tpu.vector_store %arg6[%c0_15, %c0_16], %23 {strides = array<i32>} : memref<8x128xf32, #tpu.memory_space<vmem>>, vector<8x128xf32>,
      %cst_17 = arith.constant 0.000000e+00 : f32
      %25 = vector.broadcast %cst_17 : f32 to vector<8x128xf32>
      %c0_18 = arith.constant 0 : index
      %c0_19 = arith.constant 0 : index
      %26 = vector.load %arg7[%c0_18, %c0_19] : memref<8x128xf32, #tpu.memory_space<vmem>>, vector<8x128xf32>
      tpu.vector_store %arg7[%c0_18, %c0_19], %25 {strides = array<i32>} : memref<8x128xf32, #tpu.memory_space<vmem>>, vector<8x128xf32>,
    } else {
    }
    %c0 = arith.constant 0 : index
    %c0_1 = arith.constant 0 : index
    %5 = vector.load %arg2[%c0, %c0_1] : memref<16x128xf32, #tpu.memory_space<vmem>>, vector<16x128xf32>
    %c0_2 = arith.constant 0 : index
    %c0_3 = arith.constant 0 : index
    %6 = vector.load %arg3[%c0_2, %c0_3] : memref<16x128xf32, #tpu.memory_space<vmem>>, vector<16x128xf32>
    %cst = arith.constant 5.000000e-01 : f32
    %7 = vector.broadcast %cst : f32 to vector<16x128xf32>
    %8 = arith.mulf %7, %5 : vector<16x128xf32>
    %9 = math.tanh %8 : vector<16x128xf32>
    %c1_i32_4 = arith.constant 1 : i32
    %10 = arith.addi %1, %c1_i32_4 : i32
    %c16_i32 = arith.constant 16 : i32
    %11 = arith.muli %10, %c16_i32 : i32
    %c16_i32_5 = arith.constant 16 : i32
    %12 = arith.cmpi sle, %11, %c16_i32_5 : i32
    %13 = arith.extui %12 : i1 to i32
    %c0_i32_6 = arith.constant 0 : i32
    %14 = arith.cmpi ne, %13, %c0_i32_6 : i32
    scf.if %14 {
      %c0_11 = arith.constant 0 : index
      %c0_12 = arith.constant 0 : index
      %21 = vector.load %arg5[%c0_11, %c0_12] : memref<8x128xf32, #tpu.memory_space<vmem>>, vector<8x128xf32>
      %22 = arith.mulf %9, %6 : vector<16x128xf32>
      %23 = vector.shape_cast %22 : vector<16x128xf32> to vector<2x8x128xf32>
      %cst_13 = arith.constant dense<0.000000e+00> : vector<8x128xf32>
      %24 = vector.multi_reduction <add>, %23, %cst_13 [0] : vector<2x8x128xf32> to vector<8x128xf32>
      %25 = arith.addf %21, %24 : vector<8x128xf32>
      %c0_14 = arith.constant 0 : index
      %c0_15 = arith.constant 0 : index
      %26 = vector.load %arg5[%c0_14, %c0_15] : memref<8x128xf32, #tpu.memory_space<vmem>>, vector<8x128xf32>
      tpu.vector_store %arg5[%c0_14, %c0_15], %25 {strides = array<i32>} : memref<8x128xf32, #tpu.memory_space<vmem>>, vector<8x128xf32>,
      %c0_16 = arith.constant 0 : index
      %c0_17 = arith.constant 0 : index
      %27 = vector.load %arg6[%c0_16, %c0_17] : memref<8x128xf32, #tpu.memory_space<vmem>>, vector<8x128xf32>
      %28 = vector.shape_cast %9 : vector<16x128xf32> to vector<2x8x128xf32>
      %cst_18 = arith.constant dense<0.000000e+00> : vector<8x128xf32>
      %29 = vector.multi_reduction <add>, %28, %cst_18 [0] : vector<2x8x128xf32> to vector<8x128xf32>
      %30 = arith.addf %27, %29 : vector<8x128xf32>
      %c0_19 = arith.constant 0 : index
      %c0_20 = arith.constant 0 : index
      %31 = vector.load %arg6[%c0_19, %c0_20] : memref<8x128xf32, #tpu.memory_space<vmem>>, vector<8x128xf32>
      tpu.vector_store %arg6[%c0_19, %c0_20], %30 {strides = array<i32>} : memref<8x128xf32, #tpu.memory_space<vmem>>, vector<8x128xf32>,
      %c0_21 = arith.constant 0 : index
      %c0_22 = arith.constant 0 : index
      %32 = vector.load %arg7[%c0_21, %c0_22] : memref<8x128xf32, #tpu.memory_space<vmem>>, vector<8x128xf32>
      %33 = vector.shape_cast %6 : vector<16x128xf32> to vector<2x8x128xf32>
      %cst_23 = arith.constant dense<0.000000e+00> : vector<8x128xf32>
      %34 = vector.multi_reduction <add>, %33, %cst_23 [0] : vector<2x8x128xf32> to vector<8x128xf32>
      %35 = arith.addf %32, %34 : vector<8x128xf32>
      %c0_24 = arith.constant 0 : index
      %c0_25 = arith.constant 0 : index
      %36 = vector.load %arg7[%c0_24, %c0_25] : memref<8x128xf32, #tpu.memory_space<vmem>>, vector<8x128xf32>
      tpu.vector_store %arg7[%c0_24, %c0_25], %35 {strides = array<i32>} : memref<8x128xf32, #tpu.memory_space<vmem>>, vector<8x128xf32>,
    } else {
    }
    %c16_i32_7 = arith.constant 16 : i32
    %15 = arith.cmpi sgt, %11, %c16_i32_7 : i32
    %16 = arith.extui %15 : i1 to i32
    %c0_i32_8 = arith.constant 0 : i32
    %17 = arith.cmpi ne, %16, %c0_i32_8 : i32
    scf.if %17 {
      %21 = tpu.iota {dimensions = array<i32: 0>} : vector<16x128xi32>
      %c16_i32_11 = arith.constant 16 : i32
      %22 = arith.muli %1, %c16_i32_11 : i32
      %23 = vector.broadcast %22 : i32 to vector<16x128xi32>
      %24 = arith.addi %23, %21 : vector<16x128xi32>
      %c16_i32_12 = arith.constant 16 : i32
      %25 = vector.broadcast %c16_i32_12 : i32 to vector<16x128xi32>
      %26 = arith.cmpi slt, %24, %25 : vector<16x128xi32>
      %cst_13 = arith.constant 0.000000e+00 : f32
      %27 = vector.broadcast %cst_13 : f32 to vector<16x128xf32>
      %28 = arith.select %26, %9, %27 : vector<16x128xi1>, vector<16x128xf32>
      %cst_14 = arith.constant 0.000000e+00 : f32
      %29 = vector.broadcast %cst_14 : f32 to vector<16x128xf32>
      %30 = arith.select %26, %6, %29 : vector<16x128xi1>, vector<16x128xf32>
      %c0_15 = arith.constant 0 : index
      %c0_16 = arith.constant 0 : index
      %31 = vector.load %arg5[%c0_15, %c0_16] : memref<8x128xf32, #tpu.memory_space<vmem>>, vector<8x128xf32>
      %32 = arith.mulf %28, %30 : vector<16x128xf32>
      %33 = vector.shape_cast %32 : vector<16x128xf32> to vector<2x8x128xf32>
      %cst_17 = arith.constant dense<0.000000e+00> : vector<8x128xf32>
      %34 = vector.multi_reduction <add>, %33, %cst_17 [0] : vector<2x8x128xf32> to vector<8x128xf32>
      %35 = arith.addf %31, %34 : vector<8x128xf32>
      %c0_18 = arith.constant 0 : index
      %c0_19 = arith.constant 0 : index
      %36 = vector.load %arg5[%c0_18, %c0_19] : memref<8x128xf32, #tpu.memory_space<vmem>>, vector<8x128xf32>
      tpu.vector_store %arg5[%c0_18, %c0_19], %35 {strides = array<i32>} : memref<8x128xf32, #tpu.memory_space<vmem>>, vector<8x128xf32>,
      %c0_20 = arith.constant 0 : index
      %c0_21 = arith.constant 0 : index
      %37 = vector.load %arg6[%c0_20, %c0_21] : memref<8x128xf32, #tpu.memory_space<vmem>>, vector<8x128xf32>
      %38 = vector.shape_cast %28 : vector<16x128xf32> to vector<2x8x128xf32>
      %cst_22 = arith.constant dense<0.000000e+00> : vector<8x128xf32>
      %39 = vector.multi_reduction <add>, %38, %cst_22 [0] : vector<2x8x128xf32> to vector<8x128xf32>
      %40 = arith.addf %37, %39 : vector<8x128xf32>
      %c0_23 = arith.constant 0 : index
      %c0_24 = arith.constant 0 : index
      %41 = vector.load %arg6[%c0_23, %c0_24] : memref<8x128xf32, #tpu.memory_space<vmem>>, vector<8x128xf32>
      tpu.vector_store %arg6[%c0_23, %c0_24], %40 {strides = array<i32>} : memref<8x128xf32, #tpu.memory_space<vmem>>, vector<8x128xf32>,
      %c0_25 = arith.constant 0 : index
      %c0_26 = arith.constant 0 : index
      %42 = vector.load %arg7[%c0_25, %c0_26] : memref<8x128xf32, #tpu.memory_space<vmem>>, vector<8x128xf32>
      %43 = vector.shape_cast %30 : vector<16x128xf32> to vector<2x8x128xf32>
      %cst_27 = arith.constant dense<0.000000e+00> : vector<8x128xf32>
      %44 = vector.multi_reduction <add>, %43, %cst_27 [0] : vector<2x8x128xf32> to vector<8x128xf32>
      %45 = arith.addf %42, %44 : vector<8x128xf32>
      %c0_28 = arith.constant 0 : index
      %c0_29 = arith.constant 0 : index
      %46 = vector.load %arg7[%c0_28, %c0_29] : memref<8x128xf32, #tpu.memory_space<vmem>>, vector<8x128xf32>
      tpu.vector_store %arg7[%c0_28, %c0_29], %45 {strides = array<i32>} : memref<8x128xf32, #tpu.memory_space<vmem>>, vector<8x128xf32>,
    } else {
    }
    %c0_i32_9 = arith.constant 0 : i32
    %18 = arith.cmpi eq, %arg1, %c0_i32_9 : i32
    %19 = arith.extui %18 : i1 to i32
    %c0_i32_10 = arith.constant 0 : i32
    %20 = arith.cmpi ne, %19, %c0_i32_10 : i32
    scf.if %20 {
      %c0_11 = arith.constant 0 : index
      %c0_12 = arith.constant 0 : index
      %21 = vector.load %arg5[%c0_11, %c0_12] : memref<8x128xf32, #tpu.memory_space<vmem>>, vector<8x128xf32>
      %c0_13 = arith.constant 0 : index
      %c0_14 = arith.constant 0 : index
      %c0_15 = arith.constant 0 : index
      %c0_16 = arith.constant 0 : index
      %22 = vector.load %arg4[%c0_13, %c0_14, %c0_15, %c0_16] : memref<1x3x8x128xf32, #tpu.memory_space<vmem>>, vector<1x1x8x128xf32>
      %23 = vector.shape_cast %22 : vector<1x1x8x128xf32> to vector<8x128xf32>
      %24 = vector.shape_cast %21 : vector<8x128xf32> to vector<1x1x8x128xf32>
      tpu.vector_store %arg4[%c0_13, %c0_14, %c0_15, %c0_16], %24 {strides = array<i32>} : memref<1x3x8x128xf32, #tpu.memory_space<vmem>>, vector<1x1x8x128xf32>,
      %c0_17 = arith.constant 0 : index
      %c0_18 = arith.constant 0 : index
      %25 = vector.load %arg6[%c0_17, %c0_18] : memref<8x128xf32, #tpu.memory_space<vmem>>, vector<8x128xf32>
      %c0_19 = arith.constant 0 : index
      %c1 = arith.constant 1 : index
      %c0_20 = arith.constant 0 : index
      %c0_21 = arith.constant 0 : index
      %26 = vector.load %arg4[%c0_19, %c1, %c0_20, %c0_21] : memref<1x3x8x128xf32, #tpu.memory_space<vmem>>, vector<1x1x8x128xf32>
      %27 = vector.shape_cast %26 : vector<1x1x8x128xf32> to vector<8x128xf32>
      %28 = vector.shape_cast %25 : vector<8x128xf32> to vector<1x1x8x128xf32>
      tpu.vector_store %arg4[%c0_19, %c1, %c0_20, %c0_21], %28 {strides = array<i32>} : memref<1x3x8x128xf32, #tpu.memory_space<vmem>>, vector<1x1x8x128xf32>,
      %c0_22 = arith.constant 0 : index
      %c0_23 = arith.constant 0 : index
      %29 = vector.load %arg7[%c0_22, %c0_23] : memref<8x128xf32, #tpu.memory_space<vmem>>, vector<8x128xf32>
      %c0_24 = arith.constant 0 : index
      %c2 = arith.constant 2 : index
      %c0_25 = arith.constant 0 : index
      %c0_26 = arith.constant 0 : index
      %30 = vector.load %arg4[%c0_24, %c2, %c0_25, %c0_26] : memref<1x3x8x128xf32, #tpu.memory_space<vmem>>, vector<1x1x8x128xf32>
      %31 = vector.shape_cast %30 : vector<1x1x8x128xf32> to vector<8x128xf32>
      %32 = vector.shape_cast %29 : vector<8x128xf32> to vector<1x1x8x128xf32>
      tpu.vector_store %arg4[%c0_24, %c2, %c0_25, %c0_26], %32 {strides = array<i32>} : memref<1x3x8x128xf32, #tpu.memory_space<vmem>>, vector<1x1x8x128xf32>,
    } else {
    }
    return
  }
  func.func @transform_0(%arg0: i32, %arg1: i32) -> (i32, i32) {
    %c1_i32 = arith.constant 1 : i32
    %0 = arith.muli %arg0, %c1_i32 : i32
    %1 = arith.addi %0, %arg1 : i32
    %c0_i32 = arith.constant 0 : i32
    %2 = arith.minsi %1, %c0_i32 : i32
    %c0_i32_0 = arith.constant 0 : i32
    %c0_i32_1 = arith.constant 0 : i32
    return %2, %c0_i32_0 : i32, i32
  }
  func.func @transform_1(%arg0: i32, %arg1: i32) -> (i32, i32) {
    %c1_i32 = arith.constant 1 : i32
    %0 = arith.muli %arg0, %c1_i32 : i32
    %1 = arith.addi %0, %arg1 : i32
    %c0_i32 = arith.constant 0 : i32
    %2 = arith.minsi %1, %c0_i32 : i32
    %c0_i32_0 = arith.constant 0 : i32
    %c0_i32_1 = arith.constant 0 : i32
    return %2, %c0_i32_0 : i32, i32
  }
  func.func @transform_2(%arg0: i32, %arg1: i32) -> (i32, i32, i32, i32) {
    %c0_i32 = arith.constant 0 : i32
    %c0_i32_0 = arith.constant 0 : i32
    %c0_i32_1 = arith.constant 0 : i32
    %c0_i32_2 = arith.constant 0 : i32
    return %arg0, %c0_i32, %c0_i32_0, %c0_i32_1 : i32, i32, i32, i32
  }
}

</mosaic_0001>

<llo_original>
// kernel: dice_loss.1
$region0: #{dice_loss.1}
  #allocation0 [shape = 'u32[]', space=smem, size = 0x4, offset = 0x4, fixed_abs, tag = 'smem constant byte address 0x4 - core index']
  #allocation1 [shape = 'u32[144,128]{1,0:T(1,128)}', space=vmem, size = 0x12000, scoped, tag = 'internal scratch']
  #allocation2 [shape = 'f32[8,128]{1,0:T(8,128)}', space=vmem, size = 0x1000, scoped, tag = 'scratch operand']
  #allocation3 [shape = 'f32[8,128]{1,0:T(8,128)}', space=vmem, size = 0x1000, scoped, tag = 'scratch operand']
  #allocation4 [shape = 'f32[8,128]{1,0:T(8,128)}', space=vmem, size = 0x1000, scoped, tag = 'scratch operand']
  %s0 = inlined_call_operand.vmem [shape: f32[16,128], index: 0, kind: input, shape index: {}]
  %s1 = inlined_call_operand.vmem [shape: f32[16,128], index: 1, kind: input, shape index: {}]
  %s2 = inlined_call_operand.vmem [shape: f32[2,3,8,128], index: 2, kind: output, shape index: {}]
  %s3 = sld [smem:[#allocation0]]
  $region57: #{dice_loss.1} parent=0
    _
  %s5 = ssub.s32 1, %s3
  %s6 = scalar_select 0, %s5, %s3
  loop: start=0, step=1, limit=4
  $region2: #{dice_loss.1} parent=0 // loop_pre_header
    _
  $region3: #{dice_loss.1} parent=0 // loop_header
    %s8 = sphi 0, %s12
    %p9 = scmp.ge.s32.totalorder %s8, 4
    %s15 = sphi 0, %s27
    %s16 = sphi 0, %s23
    %s17 = sphi 0, %s15
    %s18 = sphi 0, %s16
    %s19 = sphi 0, %s17
    %s20 = sphi 0, %s18
    %s36 = sphi 0, %s38
    %s39 = sphi 0, %s36
    %s40 = sphi 0, %s39
    %s56 = sphi 0, %s40
    %s68 = sphi 0, %s70
    %s71 = sphi 0, %s68
    %s72 = sphi 0, %s71
    %s88 = sphi 0, %s72
    %s94 = sphi 0, %s96
    %s97 = sphi 0, %s94
    %s98 = sphi 0, %s97
    %s114 = sphi 0, %s98
  $region4: #{dice_loss.1} parent=0 // loop_header_branch
    %11 = sbr.rel (%p9) target = $region8
  $region5: #{dice_loss.1} parent=0 // loop_body
    %s13 = ssub.s32 %s8, 1
    %s14 = ssub.s32 %s8, 2
    %s21 = sadd.s32 1, %s16
    %p22 = scmp.ge.s32.totalorder %s21, 1
    %s23 = scalar_select %p22, 0, %s21
    %s24 = sadd.s32 1, %s15
    %s25 = scalar_select %p22, %s24, %s15
    %p26 = scmp.ge.s32.totalorder %s25, 2
    %s27 = scalar_select %p26, 0, %s25
    %s28 = sadd.s32 %s15, %s16
    %p29 = scmp.lt.s32.totalorder %s28, 0
    %s30 = scalar_select %p29, %s28, 0
    %s31 = sadd.s32 %s27, %s23
    %p32 = scmp.lt.s32.totalorder %s31, 0
    %s33 = scalar_select %p32, %s31, 0
    %s34 = ssub.s32 %s30, %s33
    %p35 = scmp.eq.s32.totalorder %s34, 0
    %s37 = sadd.s32 %s36, 1
    %s38 = scalar_select %p35, %s36, %s37
    %p41 = pneg %p35
    %p42 = scmp.eq.s32.totalorder %s8, 1
    %p43 = por %p41, %p42
    %p44 = scmp.ne.s32.totalorder %s36, %s39
    %p45 = scmp.eq.s32.totalorder %s8, 0
    %p46 = por %p44, %p45
    %p47 = scmp.ne.s32.totalorder %s36, %s39
    %p48 = scmp.eq.s32.totalorder %s13, 1
    %p49 = por %p47, %p48
    %p50 = scmp.ne.s32.totalorder %s39, %s40
    %p51 = scmp.eq.s32.totalorder %s13, 0
    %p52 = por %p50, %p51
    %p53 = scmp.ne.s32.totalorder %s39, %s40
    %p54 = scmp.eq.s32.totalorder %s14, 1
    %p55 = por %p53, %p54
    %p57 = scmp.ne.s32.totalorder %s40, %s56
    %p58 = scmp.eq.s32.totalorder %s14, 0
    %p59 = por %p57, %p58
    %s60 = sadd.s32 %s15, %s16
    %p61 = scmp.lt.s32.totalorder %s60, 0
    %s62 = scalar_select %p61, %s60, 0
    %s63 = sadd.s32 %s27, %s23
    %p64 = scmp.lt.s32.totalorder %s63, 0
    %s65 = scalar_select %p64, %s63, 0
    %s66 = ssub.s32 %s62, %s65
    %p67 = scmp.eq.s32.totalorder %s66, 0
    %s69 = sadd.s32 %s68, 1
    %s70 = scalar_select %p67, %s68, %s69
    %p73 = pneg %p67
    %p74 = scmp.eq.s32.totalorder %s8, 1
    %p75 = por %p73, %p74
    %p76 = scmp.ne.s32.totalorder %s68, %s71
    %p77 = scmp.eq.s32.totalorder %s8, 0
    %p78 = por %p76, %p77
    %p79 = scmp.ne.s32.totalorder %s68, %s71
    %p80 = scmp.eq.s32.totalorder %s13, 1
    %p81 = por %p79, %p80
    %p82 = scmp.ne.s32.totalorder %s71, %s72
    %p83 = scmp.eq.s32.totalorder %s13, 0
    %p84 = por %p82, %p83
    %p85 = scmp.ne.s32.totalorder %s71, %s72
    %p86 = scmp.eq.s32.totalorder %s14, 1
    %p87 = por %p85, %p86
    %p89 = scmp.ne.s32.totalorder %s72, %s88
    %p90 = scmp.eq.s32.totalorder %s14, 0
    %p91 = por %p89, %p90
    %s92 = ssub.s32 %s15, %s27
    %p93 = scmp.eq.s32.totalorder %s92, 0
    %s95 = sadd.s32 %s94, 1
    %s96 = scalar_select %p93, %s94, %s95
    %p99 = pneg %p93
    %p100 = scmp.eq.s32.totalorder %s8, 1
    %p101 = por %p99, %p100
    %p102 = scmp.ne.s32.totalorder %s94, %s97
    %p103 = scmp.eq.s32.totalorder %s8, 0
    %p104 = por %p102, %p103
    %p105 = scmp.ne.s32.totalorder %s94, %s97
    %p106 = scmp.eq.s32.totalorder %s13, 1
    %p107 = por %p105, %p106
    %p108 = scmp.ne.s32.totalorder %s97, %s98
    %p109 = scmp.eq.s32.totalorder %s13, 0
    %p110 = por %p108, %p109
    %p111 = scmp.ne.s32.totalorder %s97, %s98
    %p112 = scmp.eq.s32.totalorder %s14, 1
    %p113 = por %p111, %p112
    %p115 = scmp.ne.s32.totalorder %s98, %s114
    %p116 = scmp.eq.s32.totalorder %s14, 0
    %p117 = por %p115, %p116
    %p118 = scmp.le.s32.totalorder 1, %s8
    %p119 = scmp.lt.s32.totalorder %s8, 3
    %p120 = pnand %p118, %p119
    %p121 = pneg %p120
    // Predicated region
    $region9: #{dice_loss.1} parent=5 // pred_check
      _
    $region10: #{dice_loss.1} parent=5 // pred_check_branch
      %123 = sbr.rel (%p120) target = $region12
    $region11: #{dice_loss.1} parent=5 // pred_region
      %s124 = ssub.s32 %s8, 1
    $region12: #{dice_loss.1} parent=5 // pred_fallthru
      _
    %p125 = scmp.lt.s32.totalorder %s8, 2
    // Predicated region
    $region13: #{dice_loss.1} parent=5 // pred_check
      %p126 = pneg %p125
    $region14: #{dice_loss.1} parent=5 // pred_check_branch
      %128 = sbr.rel (%p126) target = $region16
    $region15: #{dice_loss.1} parent=5 // pred_region
      // Predicated region
      $region17: #{dice_loss.1} parent=15 // pred_check
        %p129 = pneg %p46
      $region18: #{dice_loss.1} parent=15 // pred_check_branch
        %131 = sbr.rel (%p129) target = $region20
      $region19: #{dice_loss.1} parent=15 // pred_region
        %s132 = sadd.s32 %s15, %s16
        %p133 = scmp.lt.s32.totalorder %s132, 0
        %s134 = scalar_select %p133, %s132, 0
        %s135 = smul.u32 2, %s134
        %p136 = scmp.lt.s32.totalorder %s135, 1
        %s137 = scalar_select %p136, %s135, 1
        %s138 = smul.addr %s137, 8
        %s139 = scalar_lea.vmem %s0, %s138
        %s140 = sadd.s32 %s15, %s16
        %p141 = scmp.lt.s32.totalorder %s140, 0
        %s142 = scalar_select %p141, %s140, 0
        %s143 = smul.u32 2, %s142
      $region20: #{dice_loss.1} parent=15 // pred_fallthru
        _
      // Predicated region
      $region21: #{dice_loss.1} parent=15 // pred_check
        %p144 = pneg %p78
      $region22: #{dice_loss.1} parent=15 // pred_check_branch
        %146 = sbr.rel (%p144) target = $region24
      $region23: #{dice_loss.1} parent=15 // pred_region
        %s147 = sadd.s32 %s15, %s16
        %p148 = scmp.lt.s32.totalorder %s147, 0
        %s149 = scalar_select %p148, %s147, 0
        %s150 = smul.u32 2, %s149
        %p151 = scmp.lt.s32.totalorder %s150, 1
        %s152 = scalar_select %p151, %s150, 1
        %s153 = smul.addr %s152, 8
        %s154 = scalar_lea.vmem %s1, %s153
        %s155 = sadd.s32 %s15, %s16
        %p156 = scmp.lt.s32.totalorder %s155, 0
        %s157 = scalar_select %p156, %s155, 0
        %s158 = smul.u32 2, %s157
      $region24: #{dice_loss.1} parent=15 // pred_fallthru
        _
    $region16: #{dice_loss.1} parent=5 // pred_fallthru
      _
    %p159 = scmp.le.s32.totalorder 1, %s8
    %p160 = scmp.lt.s32.totalorder %s8, 3
    %p161 = pnand %p159, %p160
    %p162 = pneg %p161
    // Predicated region
    $region25: #{dice_loss.1} parent=5 // pred_check
      _
    $region26: #{dice_loss.1} parent=5 // pred_check_branch
      %164 = sbr.rel (%p161) target = $region28
    $region27: #{dice_loss.1} parent=5 // pred_region
      %s165 = ssub.s32 %s8, 1
      %s166 = sadd.s32 %s17, %s18
      %p167 = scmp.lt.s32.totalorder %s166, 0
      %s168 = scalar_select %p167, %s166, 0
      %s169 = smul.u32 2, %s168
      %p170 = scmp.lt.s32.totalorder %s169, 1
      %s171 = scalar_select %p170, %s169, 1
      %s172 = smul.addr %s171, 8
      %s173 = scalar_lea.vmem %s0, %s172
      %p174 = pneg %p52
      %p175 = pneg %p49
      %s176 = sadd.s32 %s17, %s18
      %p177 = scmp.lt.s32.totalorder %s176, 0
      %s178 = scalar_select %p177, %s176, 0
      %s179 = smul.u32 2, %s178
      %p180 = scmp.lt.s32.totalorder %s179, 1
      %s181 = scalar_select %p180, %s179, 1
      %s182 = smul.addr %s181, 8
      %s183 = scalar_lea.vmem %s1, %s182
      %p184 = pneg %p84
      %p185 = pneg %p81
      %p186 = pneg %p110
      %p187 = pneg %p107
      %p188 = scmp.lt.s32.totalorder %s17, 1
      %s189 = scalar_select %p188, %s17, 1
      %s190 = smul.addr %s189, 3
      %s191 = smul.addr %s190, 8
      %s192 = scalar_lea.vmem %s2, %s191
      %s193 = sadd.s32 %s17, %s18
      %p194 = scmp.lt.s32.totalorder %s193, 0
      %s195 = scalar_select %p194, %s193, 0
      %s196 = smul.u32 2, %s195
      %p197 = scmp.lt.s32.totalorder %s196, 1
      %s198 = scalar_select %p197, %s196, 1
      %s199 = smul.addr %s198, 8
      %s200 = scalar_lea.vmem %s0, %s199
      %s201 = sadd.s32 %s17, %s18
      %p202 = scmp.lt.s32.totalorder %s201, 0
      %s203 = scalar_select %p202, %s201, 0
      %s204 = smul.u32 2, %s203
      %s205 = sadd.s32 %s17, %s18
      %p206 = scmp.lt.s32.totalorder %s205, 0
      %s207 = scalar_select %p206, %s205, 0
      %s208 = smul.u32 2, %s207
      %p209 = scmp.lt.s32.totalorder %s208, 1
      %s210 = scalar_select %p209, %s208, 1
      %s211 = smul.addr %s210, 8
      %s212 = scalar_lea.vmem %s1, %s211
      %s213 = sadd.s32 %s17, %s18
      %p214 = scmp.lt.s32.totalorder %s213, 0
      %s215 = scalar_select %p214, %s213, 0
      %s216 = smul.u32 2, %s215
      %p217 = scmp.lt.s32.totalorder %s17, 1
      %s218 = scalar_select %p217, %s17, 1
      %s219 = smul.addr %s218, 3
      %s220 = smul.addr %s219, 8
      %s221 = scalar_lea.vmem %s2, %s220
      %s222 = sadd.s32 %s17, %s18
      %p223 = scmp.eq.s32.totalorder %s18, 0
      // Predicated region
      $region29: #{dice_loss.1} parent=27 // pred_check
        %p224 = pneg %p223
      $region30: #{dice_loss.1} parent=27 // pred_check_branch
        %226 = sbr.rel (%p224) target = $region32
      $region31: #{dice_loss.1} parent=27 // pred_region
        %227 = vst [vmem:[#allocation2] sm:$0xff] 0.0
        %228 = vst [vmem:[#allocation3] sm:$0xff] 0.0
        %229 = vst [vmem:[#allocation4] sm:$0xff] 0.0
      $region32: #{dice_loss.1} parent=27 // pred_fallthru
        _
      %v230 = vld [vmem:[%s200] sm:$0xff]
      %v231 = vld [vmem:[%s200 + $0x8] sm:$0xff]
      %v232 = vld [vmem:[%s212] sm:$0xff]
      %v233 = vld [vmem:[%s212 + $0x8] sm:$0xff]
      %v234 = vmul.f32 %v230, 0.5
      %v235 = vmul.f32 %v231, 0.5
      %v236 = vtanh.pop %v234
      %v237 = vtanh.pop %v235
      %s238 = sadd.s32 %s222, 1
      %s239 = smul.u32 %s238, 16
      %p240 = scmp.le.s32.totalorder %s239, 16
      // Predicated region
      $region33: #{dice_loss.1} parent=27 // pred_check
        %p241 = pneg %p240
      $region34: #{dice_loss.1} parent=27 // pred_check_branch
        %243 = sbr.rel (%p241) target = $region36
      $region35: #{dice_loss.1} parent=27 // pred_region
        %v244 = vld [vmem:[#allocation2] sm:$0xff]
        %v245 = vmul.f32 %v236, %v232
        %v246 = vmul.f32 %v237, %v233
        %v247 = vadd.f32 %v245, %v246
        %v248 = vadd.f32 %v244, %v247
        %249 = vst [vmem:[#allocation2] sm:$0xff] %v248
        %v250 = vld [vmem:[#allocation3] sm:$0xff]
        %v251 = vadd.f32 %v236, %v237
        %v252 = vadd.f32 %v250, %v251
        %253 = vst [vmem:[#allocation3] sm:$0xff] %v252
        %v254 = vld [vmem:[#allocation4] sm:$0xff]
        %v255 = vadd.f32 %v232, %v233
        %v256 = vadd.f32 %v254, %v255
        %257 = vst [vmem:[#allocation4] sm:$0xff] %v256
      $region36: #{dice_loss.1} parent=27 // pred_fallthru
        _
      %p258 = scmp.gt.s32.totalorder %s239, 16
      // Predicated region
      $region37: #{dice_loss.1} parent=27 // pred_check
        %p259 = pneg %p258
      $region38: #{dice_loss.1} parent=27 // pred_check_branch
        %261 = sbr.rel (%p259) target = $region40
      $region39: #{dice_loss.1} parent=27 // pred_region
        %v262 = vlaneseq
        %v263 = vshrl.u32 %v262, 7
        %v264 = vadd.s32 %v263, 8
        %s265 = smul.u32 %s222, 16
        %v266 = vstv %s265
        %v267 = vadd.s32 %v266, %v263
        %v268 = vadd.s32 %v266, %v264
        %vm269 = vcmp.lt.s32.totalorder %v267, 16
        %vm270 = vcmp.lt.s32.totalorder %v268, 16
        %v271 = vsel %vm269, %v236, 0.0
        %v272 = vsel %vm270, %v237, 0.0
        %v273 = vsel %vm269, %v232, 0.0
        %v274 = vsel %vm270, %v233, 0.0
        %v275 = vld [vmem:[#allocation2] sm:$0xff]
        %v276 = vmul.f32 %v271, %v273
        %v277 = vmul.f32 %v272, %v274
        %v278 = vadd.f32 %v276, %v277
        %v279 = vadd.f32 %v275, %v278
        %280 = vst [vmem:[#allocation2] sm:$0xff] %v279
        %v281 = vld [vmem:[#allocation3] sm:$0xff]
        %v282 = vadd.f32 %v271, %v272
        %v283 = vadd.f32 %v281, %v282
        %284 = vst [vmem:[#allocation3] sm:$0xff] %v283
        %v285 = vld [vmem:[#allocation4] sm:$0xff]
        %v286 = vadd.f32 %v273, %v274
        %v287 = vadd.f32 %v285, %v286
        %288 = vst [vmem:[#allocation4] sm:$0xff] %v287
      $region40: #{dice_loss.1} parent=27 // pred_fallthru
        _
      // Predicated region
      $region41: #{dice_loss.1} parent=27 // pred_check
        %p289 = pneg %p223
      $region42: #{dice_loss.1} parent=27 // pred_check_branch
        %291 = sbr.rel (%p289) target = $region44
      $region43: #{dice_loss.1} parent=27 // pred_region
        %v292 = vld [vmem:[#allocation2] sm:$0xff]
        %293 = vst [vmem:[%s221] sm:$0xff] %v292
        %v294 = vld [vmem:[#allocation3] sm:$0xff]
        %s295 = scalar_lea.vmem %s221, 8
        %296 = vst [vmem:[%s295] sm:$0xff] %v294
        %v297 = vld [vmem:[#allocation4] sm:$0xff]
        %s298 = scalar_lea.vmem %s221, 16
        %299 = vst [vmem:[%s298] sm:$0xff] %v297
      $region44: #{dice_loss.1} parent=27 // pred_fallthru
        _
      %p300 = scmp.lt.s32.totalorder %s17, 1
      %s301 = scalar_select %p300, %s17, 1
      %s302 = smul.addr %s301, 3
      %s303 = smul.addr %s302, 8
      %s304 = scalar_lea.vmem %s2, %s303
      // Predicated region
      $region45: #{dice_loss.1} parent=27 // pred_check
        %p305 = pneg %p107
      $region46: #{dice_loss.1} parent=27 // pred_check_branch
        %307 = sbr.rel (%p305) target = $region48
      $region47: #{dice_loss.1} parent=27 // pred_region
        _
      $region48: #{dice_loss.1} parent=27 // pred_fallthru
        _
    $region28: #{dice_loss.1} parent=5 // pred_fallthru
      _
    %p308 = scmp.le.s32.totalorder 2, %s8
    // Predicated region
    $region49: #{dice_loss.1} parent=5 // pred_check
      %p309 = pneg %p308
    $region50: #{dice_loss.1} parent=5 // pred_check_branch
      %311 = sbr.rel (%p309) target = $region52
    $region51: #{dice_loss.1} parent=5 // pred_region
      %s312 = ssub.s32 %s8, 2
      // Predicated region
      $region53: #{dice_loss.1} parent=51 // pred_check
        %p313 = pneg %p113
      $region54: #{dice_loss.1} parent=51 // pred_check_branch
        %315 = sbr.rel (%p313) target = $region56
      $region55: #{dice_loss.1} parent=51 // pred_region
        %p316 = scmp.lt.s32.totalorder %s19, 1
        %s317 = scalar_select %p316, %s19, 1
        %s318 = smul.addr %s317, 3
        %s319 = smul.addr %s318, 8
        %s320 = scalar_lea.vmem %s2, %s319
      $region56: #{dice_loss.1} parent=51 // pred_fallthru
        _
    $region52: #{dice_loss.1} parent=5 // pred_fallthru
      _
  $region6: #{dice_loss.1} parent=0 // loop_footer
    %s12 = sadd.s32 1, %s8
  $region7: #{dice_loss.1} parent=0 // loop_footer_branch
    %7 = sbr.rel target = $region3
  $region8: #{dice_loss.1} parent=0 // loop_exit
    _

</llo_original>
